<compile_context>
chip_gen: v6e
topology: v6e:2x2x1
jax: 0.10.0
libtpu: 0.0.40
codegen_flags: <defaults>
</compile_context>

<pallas_src>
import jax
import jax.numpy as jnp
from jax.experimental import pallas as pl
from jax.experimental.pallas import tpu as pltpu

IN_FEATURES = 28 * 28          # 784
HIDDEN = 256
OUT_FEATURES = 10

K_PAD = 896                    # 7 * 128  (zero-padded K, identical math)
N_PAD = 128                    # lane-dense output width (padded logits forced to -1e30)
TM = 256                       # batch tile (matches v6e/v7x 256-wide MXU; multiple of 128 for v5e)


def _round_up(x, m):
    return ((x + m - 1) // m) * m


def _mlp_softmax_kernel(x_ref, w1_ref, b1_ref, w2_ref, b2_ref, o_ref):
    # Layer 1: Linear + ReLU (MXU matmul, f32 accumulate).
    h = jnp.dot(x_ref[...], w1_ref[...], preferred_element_type=jnp.float32)
    h = jnp.maximum(h + b1_ref[...], 0.0)          # b1_ref: (1, HIDDEN) broadcasts over rows

    # Layer 2: Linear (N padded to 128 -> one clean MXU pass, lane-dense store).
    logits = jnp.dot(h, w2_ref[...], preferred_element_type=jnp.float32)
    logits = logits + b2_ref[...]                  # padded columns get bias = -1e30

    # Numerically-stable softmax over the feature dim; padded lanes contribute exp(-huge) = 0.
    m = jnp.max(logits, axis=1, keepdims=True)
    e = jnp.exp(logits - m)
    denom = jnp.sum(e, axis=1, keepdims=True)
    o_ref[...] = (e * pl.reciprocal(denom, approx=True)).astype(o_ref.dtype)


def feed_forward_net(x_nchw, w1, b1, w2, b2):
    """Forward pass matching FeedForwardNet.forward.

    x_nchw : [B, C, H, W] float32 (C*H*W must equal 784)
    w1     : [784, 256]   (torch weight transposed -> [in, out])
    b1     : [256]
    w2     : [256, 10]
    b2     : [10]
    returns: [B, 10] softmax probabilities
    """
    B = x_nchw.shape[0]
    x = x_nchw.reshape(B, -1).astype(jnp.float32)   # nn.Flatten()
    assert x.shape[1] == IN_FEATURES

    # ---- K padding (784 -> 896): zero columns / zero weight rows, math unchanged.
    x_p = jnp.pad(x, ((0, 0), (0, K_PAD - IN_FEATURES)))
    w1_p = jnp.pad(w1, ((0, K_PAD - IN_FEATURES), (0, 0)))

    # ---- N padding (10 -> 128): zero weight cols, bias of padded cols = -1e30 so the
    #      padded logits vanish under softmax.
    w2_p = jnp.pad(w2, ((0, 0), (0, N_PAD - OUT_FEATURES)))
    b2_p = jnp.pad(b2, (0, N_PAD - OUT_FEATURES), constant_values=-1e30)

    b1_2d = b1.reshape(1, HIDDEN)
    b2_2d = b2_p.reshape(1, N_PAD)

    # ---- batch tiling: TM-row tiles, batch padded with zero rows (sliced off at the end).
    tm = TM if B >= TM else _round_up(B, 8)
    b_pad = _round_up(B, tm)
    if b_pad != B:
        x_p = jnp.pad(x_p, ((0, b_pad - B), (0, 0)))
    grid = (b_pad // tm,)

    cost = pl.CostEstimate(
        flops=2 * b_pad * K_PAD * HIDDEN + 2 * b_pad * HIDDEN * N_PAD,
        transcendentals=b_pad * N_PAD + b_pad,
        bytes_accessed=4 * (x_p.size + w1_p.size + w2_p.size
                            + b1_2d.size + b2_2d.size + b_pad * N_PAD),
    )

    out_padded = pl.pallas_call(
        _mlp_softmax_kernel,
        out_shape=jax.ShapeDtypeStruct((b_pad, N_PAD), jnp.float32),
        grid=grid,
        in_specs=[
            pl.BlockSpec((tm, K_PAD), lambda i: (i, 0)),        # x tile, streamed per step
            pl.BlockSpec((K_PAD, HIDDEN), lambda i: (0, 0)),    # W1, VMEM-resident
            pl.BlockSpec((1, HIDDEN), lambda i: (0, 0)),        # b1
            pl.BlockSpec((HIDDEN, N_PAD), lambda i: (0, 0)),    # W2 (padded N)
            pl.BlockSpec((1, N_PAD), lambda i: (0, 0)),         # b2 (padded N, -1e30 tail)
        ],
        out_specs=pl.BlockSpec((tm, N_PAD), lambda i: (i, 0)),  # lane-dense 128-wide store
        compiler_params=pltpu.CompilerParams(
            dimension_semantics=("parallel",),
        ),
        cost_estimate=cost,
    )(x_p, w1_p, b1_2d, w2_p, b2_2d)

    return out_padded[:B, :OUT_FEATURES]


def init_params(key):
    """Deterministic init mimicking torch.nn.Linear default (uniform +/- 1/sqrt(fan_in)).
    Weights are stored as [in, out] (transposed vs torch's [out, in])."""
    k1, k2, k3, k4 = jax.random.split(key, 4)
    bound1 = 1.0 / jnp.sqrt(IN_FEATURES)
    bound2 = 1.0 / jnp.sqrt(HIDDEN)
    w1 = jax.random.uniform(k1, (IN_FEATURES, HIDDEN), jnp.float32, -bound1, bound1)
    b1 = jax.random.uniform(k2, (HIDDEN,), jnp.float32, -bound1, bound1)
    w2 = jax.random.uniform(k3, (HIDDEN, OUT_FEATURES), jnp.float32, -bound2, bound2)
    b2 = jax.random.uniform(k4, (OUT_FEATURES,), jnp.float32, -bound2, bound2)
    return w1, b1, w2, b2


def _reference(x_nchw, w1, b1, w2, b2):
    x = x_nchw.reshape(x_nchw.shape[0], -1)
    h = jnp.maximum(x @ w1 + b1, 0.0)
    logits = h @ w2 + b2
    return jax.nn.softmax(logits, axis=1)


if __name__ == "__main__":
    key = jax.random.PRNGKey(0)
    k_x, k_p = jax.random.split(key)

    # MNIST-like input: batch=8, NCHW = [8, 1, 28, 28]
    x = jax.random.normal(k_x, (8, 1, 28, 28), dtype=jnp.float32)
    w1, b1, w2, b2 = init_params(k_p)

    probs = feed_forward_net(x, w1, b1, w2, b2)
    probs = jax.block_until_ready(probs)

    assert probs.shape == (8, 10)

    # sanity: softmax rows sum to ~1 (approx EUP reciprocal -> slightly loose tolerance)
    row_sums = jnp.sum(probs, axis=1)
    assert bool(jnp.all(jnp.abs(row_sums - 1.0) < 5e-3)), row_sums

    # sanity: matches pure-JAX reference
    ref = _reference(x, w1, b1, w2, b2)
    assert bool(jnp.max(jnp.abs(probs - ref)) < 5e-3)

    print("KERNEL_OK")
</pallas_src>

<mosaic_0001>
module attributes {stable_mosaic.version = 11 : i64} {
  func.func @_mlp_softmax_kernel(%arg0: i32, %arg1: memref<8x896xf32, #tpu.memory_space<vmem>>, %arg2: memref<896x256xf32, #tpu.memory_space<vmem>>, %arg3: memref<1x256xf32, #tpu.memory_space<vmem>>, %arg4: memref<256x128xf32, #tpu.memory_space<vmem>>, %arg5: memref<1x128xf32, #tpu.memory_space<vmem>>, %arg6: memref<8x128xf32, #tpu.memory_space<vmem>>) attributes {dimension_semantics = [#tpu.dimension_semantics<parallel>], iteration_bounds = array<i64: 1>, scalar_prefetch = 0 : i64, scratch_operands = 0 : i64, tpu.core_type = #tpu.core_type<tc>, window_params = [{transform_indices = @transform_0, window_bounds = array<i64: 8, 896>}, {pipeline_mode = #tpu.pipeline_mode<synchronous>, transform_indices = @transform_1, window_bounds = array<i64: 896, 256>}, {pipeline_mode = #tpu.pipeline_mode<synchronous>, transform_indices = @transform_2, window_bounds = array<i64: 1, 256>}, {pipeline_mode = #tpu.pipeline_mode<synchronous>, transform_indices = @transform_3, window_bounds = array<i64: 256, 128>}, {pipeline_mode = #tpu.pipeline_mode<synchronous>, transform_indices = @transform_4, window_bounds = array<i64: 1, 128>}, {transform_indices = @transform_5, window_bounds = array<i64: 8, 128>}]} {
    %c0 = arith.constant 0 : index
    %c0_0 = arith.constant 0 : index
    %0 = vector.load %arg1[%c0, %c0_0] : memref<8x896xf32, #tpu.memory_space<vmem>>, vector<8x896xf32>
    %c0_1 = arith.constant 0 : index
    %c0_2 = arith.constant 0 : index
    %1 = vector.load %arg2[%c0_1, %c0_2] : memref<896x256xf32, #tpu.memory_space<vmem>>, vector<896x256xf32>
    %cst = arith.constant dense<0.000000e+00> : vector<8x256xf32>
    %2 = tpu.matmul %0, %1, %cst {dimension_numbers = #tpu.dot_dimension_numbers<[1], [0], [0], [1], [0, 0, 1, 1], [], []>} : vector<8x896xf32>, vector<896x256xf32>, vector<8x256xf32> -> vector<8x256xf32>
    %c0_3 = arith.constant 0 : index
    %c0_4 = arith.constant 0 : index
    %3 = vector.load %arg3[%c0_3, %c0_4] : memref<1x256xf32, #tpu.memory_space<vmem>>, vector<1x256xf32>
    %4 = vector.broadcast %3 : vector<1x256xf32> to vector<8x256xf32>
    %5 = arith.addf %2, %4 : vector<8x256xf32>
    %cst_5 = arith.constant 0.000000e+00 : f32
    %6 = vector.broadcast %cst_5 : f32 to vector<8x256xf32>
    %7 = arith.maximumf %5, %6 : vector<8x256xf32>
    %c0_6 = arith.constant 0 : index
    %c0_7 = arith.constant 0 : index
    %8 = vector.load %arg4[%c0_6, %c0_7] : memref<256x128xf32, #tpu.memory_space<vmem>>, vector<256x128xf32>
    %cst_8 = arith.constant dense<0.000000e+00> : vector<8x128xf32>
    %9 = tpu.matmul %7, %8, %cst_8 {dimension_numbers = #tpu.dot_dimension_numbers<[1], [0], [0], [1], [0, 0, 1, 1], [], []>} : vector<8x256xf32>, vector<256x128xf32>, vector<8x128xf32> -> vector<8x128xf32>
    %c0_9 = arith.constant 0 : index
    %c0_10 = arith.constant 0 : index
    %10 = vector.load %arg5[%c0_9, %c0_10] : memref<1x128xf32, #tpu.memory_space<vmem>>, vector<1x128xf32>
    %11 = vector.broadcast %10 : vector<1x128xf32> to vector<8x128xf32>
    %12 = arith.addf %9, %11 : vector<8x128xf32>
    %cst_11 = arith.constant dense<0xFF800000> : vector<8xf32>
    %13 = vector.multi_reduction <maximumf>, %12, %cst_11 [1] : vector<8x128xf32> to vector<8xf32>
    %14 = vector.shape_cast %13 : vector<8xf32> to vector<8x1xf32>
    %15 = vector.broadcast %14 : vector<8x1xf32> to vector<8x128xf32>
    %16 = arith.subf %12, %15 : vector<8x128xf32>
    %17 = math.exp %16 : vector<8x128xf32>
    %cst_12 = arith.constant dense<0.000000e+00> : vector<8xf32>
    %18 = vector.multi_reduction <add>, %17, %cst_12 [1] : vector<8x128xf32> to vector<8xf32>
    %19 = vector.shape_cast %18 : vector<8xf32> to vector<8x1xf32>
    %20 = tpu.reciprocal %19 {approx = true} : vector<8x1xf32> -> vector<8x1xf32>
    %21 = vector.broadcast %20 : vector<8x1xf32> to vector<8x128xf32>
    %22 = arith.mulf %17, %21 : vector<8x128xf32>
    %c0_13 = arith.constant 0 : index
    %c0_14 = arith.constant 0 : index
    %23 = vector.load %arg6[%c0_13, %c0_14] : memref<8x128xf32, #tpu.memory_space<vmem>>, vector<8x128xf32>
    tpu.vector_store %arg6[%c0_13, %c0_14], %22 {strides = array<i32>} : memref<8x128xf32, #tpu.memory_space<vmem>>, vector<8x128xf32>,
    return
  }
  func.func @transform_0(%arg0: i32) -> (i32, i32) {
    %c0_i32 = arith.constant 0 : i32
    %c0_i32_0 = arith.constant 0 : i32
    return %arg0, %c0_i32 : i32, i32
  }
  func.func @transform_1(%arg0: i32) -> (i32, i32) {
    %c0_i32 = arith.constant 0 : i32
    %c0_i32_0 = arith.constant 0 : i32
    %c0_i32_1 = arith.constant 0 : i32
    return %c0_i32, %c0_i32_0 : i32, i32
  }
  func.func @transform_2(%arg0: i32) -> (i32, i32) {
    %c0_i32 = arith.constant 0 : i32
    %c0_i32_0 = arith.constant 0 : i32
    %c0_i32_1 = arith.constant 0 : i32
    return %c0_i32, %c0_i32_0 : i32, i32
  }
  func.func @transform_3(%arg0: i32) -> (i32, i32) {
    %c0_i32 = arith.constant 0 : i32
    %c0_i32_0 = arith.constant 0 : i32
    %c0_i32_1 = arith.constant 0 : i32
    return %c0_i32, %c0_i32_0 : i32, i32
  }
  func.func @transform_4(%arg0: i32) -> (i32, i32) {
    %c0_i32 = arith.constant 0 : i32
    %c0_i32_0 = arith.constant 0 : i32
    %c0_i32_1 = arith.constant 0 : i32
    return %c0_i32, %c0_i32_0 : i32, i32
  }
  func.func @transform_5(%arg0: i32) -> (i32, i32) {
    %c0_i32 = arith.constant 0 : i32
    %c0_i32_0 = arith.constant 0 : i32
    return %arg0, %c0_i32 : i32, i32
  }
}

</mosaic_0001>

<llo_original>
// kernel: tpu_custom_call.1
$region0: #{tpu_custom_call.1}
  #allocation0 [shape = 'u32[]', space=smem, size = 0x4, offset = 0x4, fixed_abs, tag = 'smem constant byte address 0x4 - core index']
  #allocation1 [shape = 'u32[144,128]{1,0:T(1,128)}', space=vmem, size = 0x12000, scoped, tag = 'internal scratch']
  %s0 = inlined_call_operand.hbm [shape: f32[8,896], index: 0, kind: input, shape index: {}]
  %s1 = inlined_call_operand.hbm [shape: f32[896,256], index: 1, kind: input, shape index: {}]
  %s2 = inlined_call_operand.vmem [shape: f32[1,256], index: 2, kind: input, shape index: {}]
  %s3 = inlined_call_operand.hbm [shape: f32[256,128], index: 3, kind: input, shape index: {}]
  %s4 = inlined_call_operand.vmem [shape: f32[1,128], index: 4, kind: input, shape index: {}]
  %s5 = inlined_call_operand.hbm [shape: f32[8,128], index: 5, kind: output, shape index: {}]
  %s6 = sld [smem:[#allocation0]]
  $region42: #{tpu_custom_call.1} parent=0
    _
  %s8 = ssub.s32 1, %s6
  %s9 = scalar_select 0, %s8, %s6
  $region1: #{tpu_custom_call.1} parent=0
    #allocation2 [shape = 'u8[28672]{0}', space=vmem, size = 0x7000, scoped, tag = 'input window, operand 0, single buffered']
    #allocation3 [shape = 's32[1]{0}', space=sflag, size = 0x4, scoped, tag = 'scoped memory for tpu_custom_call.1']
    #allocation4 [shape = 's32[1]{0}', space=sflag, size = 0x4, scoped, tag = 'scoped memory for tpu_custom_call.1']
    #allocation5 [shape = 'u8[917504]{0}', space=vmem, size = 0xe0000, scoped, tag = 'input window, operand 1, single buffered']
    #allocation6 [shape = 's32[1]{0}', space=sflag, size = 0x4, scoped, tag = 'scoped memory for tpu_custom_call.1']
    #allocation7 [shape = 'u8[131072]{0}', space=vmem, size = 0x20000, scoped, tag = 'input window, operand 3, single buffered']
    #allocation8 [shape = 'u8[4096]{0}', space=vmem, size = 0x1000, scoped, tag = 'output window, operand 0, single buffered']
    %10 = vsyncpa [#allocation3], 0
    %11 = vsyncpa [#allocation6], 0
    %12 = vsyncpa [#allocation4], 0
    // Predicated region
    $region2: #{tpu_custom_call.1} parent=1 // pred_check
      _
    $region3: #{tpu_custom_call.1} parent=1 // pred_check_branch
      %14 = sbr.rel (0) target = $region5
    $region4: #{tpu_custom_call.1} parent=1 // pred_region
      %s16 = ssub.s32 896, 896
      %17 = vsyncadd [#allocation3], %s16
      %s19 = sshll.u32 [#allocation2], 4
      %s20 = int_to_ptr.vmem [resolvable:$true] %s19
      %22 = dma.hbm_to_vmem [thread:$0]  %s0, 896, %s20, [#allocation3]
    $region5: #{tpu_custom_call.1} parent=1 // pred_fallthru
      _
    // Predicated region
    $region6: #{tpu_custom_call.1} parent=1 // pred_check
      _
    $region7: #{tpu_custom_call.1} parent=1 // pred_check_branch
      %24 = sbr.rel (0) target = $region9
    $region8: #{tpu_custom_call.1} parent=1 // pred_region
      %s26 = ssub.s32 28672, 28672
      %27 = vsyncadd [#allocation6], %s26
      %s28 = sshll.u32 [#allocation5], 4
      %s29 = int_to_ptr.vmem [resolvable:$true] %s28
      %34 = dma.hbm_to_vmem [thread:$0]  %s1, 28672, %s29, [#allocation6], 256, 256, 16
    $region9: #{tpu_custom_call.1} parent=1 // pred_fallthru
      _
    // Predicated region
    $region10: #{tpu_custom_call.1} parent=1 // pred_check
      _
    $region11: #{tpu_custom_call.1} parent=1 // pred_check_branch
      %36 = sbr.rel (0) target = $region13
    $region12: #{tpu_custom_call.1} parent=1 // pred_region
      _
    $region13: #{tpu_custom_call.1} parent=1 // pred_fallthru
      _
    // Predicated region
    $region14: #{tpu_custom_call.1} parent=1 // pred_check
      _
    $region15: #{tpu_custom_call.1} parent=1 // pred_check_branch
      %38 = sbr.rel (0) target = $region17
    $region16: #{tpu_custom_call.1} parent=1 // pred_region
      %s40 = ssub.s32 4096, 4096
      %41 = vsyncadd [#allocation6], %s40
      %s42 = sshll.u32 [#allocation7], 4
      %s43 = int_to_ptr.vmem [resolvable:$true] %s42
      %48 = dma.hbm_to_vmem [thread:$0]  %s3, 4096, %s43, [#allocation6], 128, 128, 8
    $region17: #{tpu_custom_call.1} parent=1 // pred_fallthru
      _
    // Predicated region
    $region18: #{tpu_custom_call.1} parent=1 // pred_check
      _
    $region19: #{tpu_custom_call.1} parent=1 // pred_check_branch
      %50 = sbr.rel (0) target = $region21
    $region20: #{tpu_custom_call.1} parent=1 // pred_region
      _
    $region21: #{tpu_custom_call.1} parent=1 // pred_fallthru
      _
    // Predicated region
    $region22: #{tpu_custom_call.1} parent=1 // pred_check
      _
    $region23: #{tpu_custom_call.1} parent=1 // pred_check_branch
      %52 = sbr.rel (0) target = $region25
    $region24: #{tpu_custom_call.1} parent=1 // pred_region
      %53 = dma.done [#allocation3], 896
    $region25: #{tpu_custom_call.1} parent=1 // pred_fallthru
      _
    // Predicated region
    $region26: #{tpu_custom_call.1} parent=1 // pred_check
      _
    $region27: #{tpu_custom_call.1} parent=1 // pred_check_branch
      %55 = sbr.rel (0) target = $region29
    $region28: #{tpu_custom_call.1} parent=1 // pred_region
      %56 = dma.done [#allocation6], 28672
    $region29: #{tpu_custom_call.1} parent=1 // pred_fallthru
      _
    // Predicated region
    $region30: #{tpu_custom_call.1} parent=1 // pred_check
      _
    $region31: #{tpu_custom_call.1} parent=1 // pred_check_branch
      %58 = sbr.rel (0) target = $region33
    $region32: #{tpu_custom_call.1} parent=1 // pred_region
      %59 = dma.done [#allocation6], 4096
    $region33: #{tpu_custom_call.1} parent=1 // pred_fallthru
      _
    %v60 = vld [vmem:[#allocation2] sm:$0xff]
    %v61 = vld [vmem:[#allocation2 + $0x8] sm:$0xff]
    %v62 = vld [vmem:[#allocation2 + $0x10] sm:$0xff]
    %v63 = vld [vmem:[#allocation2 + $0x18] sm:$0xff]
    %v64 = vld [vmem:[#allocation2 + $0x20] sm:$0xff]
    %v65 = vld [vmem:[#allocation2 + $0x28] sm:$0xff]
    %v66 = vld [vmem:[#allocation2 + $0x30] sm:$0xff]
    %v67 = vld [vmem:[#allocation5] sm:$0xff]
    %v68 = vld [vmem:[#allocation5 + $0x8] sm:$0xff]
    %v69 = vld [vmem:[#allocation5 + $0x10] sm:$0xff]
    %v70 = vld [vmem:[#allocation5 + $0x18] sm:$0xff]
    %v71 = vld [vmem:[#allocation5 + $0x20] sm:$0xff]
    %v72 = vld [vmem:[#allocation5 + $0x28] sm:$0xff]
    %v73 = vld [vmem:[#allocation5 + $0x30] sm:$0xff]
    %v74 = vld [vmem:[#allocation5 + $0x38] sm:$0xff]
    %v75 = vld [vmem:[#allocation5 + $0x40] sm:$0xff]
    %v76 = vld [vmem:[#allocation5 + $0x48] sm:$0xff]
    %v77 = vld [vmem:[#allocation5 + $0x50] sm:$0xff]
    %v78 = vld [vmem:[#allocation5 + $0x58] sm:$0xff]
    %v79 = vld [vmem:[#allocation5 + $0x60] sm:$0xff]
    %v80 = vld [vmem:[#allocation5 + $0x68] sm:$0xff]
    %v81 = vld [vmem:[#allocation5 + $0x70] sm:$0xff]
    %v82 = vld [vmem:[#allocation5 + $0x78] sm:$0xff]
    %v83 = vld [vmem:[#allocation5 + $0x80] sm:$0xff]
    %v84 = vld [vmem:[#allocation5 + $0x88] sm:$0xff]
    %v85 = vld [vmem:[#allocation5 + $0x90] sm:$0xff]
    %v86 = vld [vmem:[#allocation5 + $0x98] sm:$0xff]
    %v87 = vld [vmem:[#allocation5 + $0xa0] sm:$0xff]
    %v88 = vld [vmem:[#allocation5 + $0xa8] sm:$0xff]
    %v89 = vld [vmem:[#allocation5 + $0xb0] sm:$0xff]
    %v90 = vld [vmem:[#allocation5 + $0xb8] sm:$0xff]
    %v91 = vld [vmem:[#allocation5 + $0xc0] sm:$0xff]
    %v92 = vld [vmem:[#allocation5 + $0xc8] sm:$0xff]
    %v93 = vld [vmem:[#allocation5 + $0xd0] sm:$0xff]
    %v94 = vld [vmem:[#allocation5 + $0xd8] sm:$0xff]
    %v95 = vld [vmem:[#allocation5 + $0xe0] sm:$0xff]
    %v96 = vld [vmem:[#allocation5 + $0xe8] sm:$0xff]
    %v97 = vld [vmem:[#allocation5 + $0xf0] sm:$0xff]
    %v98 = vld [vmem:[#allocation5 + $0xf8] sm:$0xff]
    %v99 = vld [vmem:[#allocation5 + $0x100] sm:$0xff]
    %v100 = vld [vmem:[#allocation5 + $0x108] sm:$0xff]
    %v101 = vld [vmem:[#allocation5 + $0x110] sm:$0xff]
    %v102 = vld [vmem:[#allocation5 + $0x118] sm:$0xff]
    %v103 = vld [vmem:[#allocation5 + $0x120] sm:$0xff]
    %v104 = vld [vmem:[#allocation5 + $0x128] sm:$0xff]
    %v105 = vld [vmem:[#allocation5 + $0x130] sm:$0xff]
    %v106 = vld [vmem:[#allocation5 + $0x138] sm:$0xff]
    %v107 = vld [vmem:[#allocation5 + $0x140] sm:$0xff]
    %v108 = vld [vmem:[#allocation5 + $0x148] sm:$0xff]
    %v109 = vld [vmem:[#allocation5 + $0x150] sm:$0xff]
    %v110 = vld [vmem:[#allocation5 + $0x158] sm:$0xff]
    %v111 = vld [vmem:[#allocation5 + $0x160] sm:$0xff]
    %v112 = vld [vmem:[#allocation5 + $0x168] sm:$0xff]
    %v113 = vld [vmem:[#allocation5 + $0x170] sm:$0xff]
    %v114 = vld [vmem:[#allocation5 + $0x178] sm:$0xff]
    %v115 = vld [vmem:[#allocation5 + $0x180] sm:$0xff]
    %v116 = vld [vmem:[#allocation5 + $0x188] sm:$0xff]
    %v117 = vld [vmem:[#allocation5 + $0x190] sm:$0xff]
    %v118 = vld [vmem:[#allocation5 + $0x198] sm:$0xff]
    %v119 = vld [vmem:[#allocation5 + $0x1a0] sm:$0xff]
    %v120 = vld [vmem:[#allocation5 + $0x1a8] sm:$0xff]
    %v121 = vld [vmem:[#allocation5 + $0x1b0] sm:$0xff]
    %v122 = vld [vmem:[#allocation5 + $0x1b8] sm:$0xff]
    %v123 = vld [vmem:[#allocation5 + $0x1c0] sm:$0xff]
    %v124 = vld [vmem:[#allocation5 + $0x1c8] sm:$0xff]
    %v125 = vld [vmem:[#allocation5 + $0x1d0] sm:$0xff]
    %v126 = vld [vmem:[#allocation5 + $0x1d8] sm:$0xff]
    %v127 = vld [vmem:[#allocation5 + $0x1e0] sm:$0xff]
    %v128 = vld [vmem:[#allocation5 + $0x1e8] sm:$0xff]
    %v129 = vld [vmem:[#allocation5 + $0x1f0] sm:$0xff]
    %v130 = vld [vmem:[#allocation5 + $0x1f8] sm:$0xff]
    %v131 = vld [vmem:[#allocation5 + $0x200] sm:$0xff]
    %v132 = vld [vmem:[#allocation5 + $0x208] sm:$0xff]
    %v133 = vld [vmem:[#allocation5 + $0x210] sm:$0xff]
    %v134 = vld [vmem:[#allocation5 + $0x218] sm:$0xff]
    %v135 = vld [vmem:[#allocation5 + $0x220] sm:$0xff]
    %v136 = vld [vmem:[#allocation5 + $0x228] sm:$0xff]
    %v137 = vld [vmem:[#allocation5 + $0x230] sm:$0xff]
    %v138 = vld [vmem:[#allocation5 + $0x238] sm:$0xff]
    %v139 = vld [vmem:[#allocation5 + $0x240] sm:$0xff]
    %v140 = vld [vmem:[#allocation5 + $0x248] sm:$0xff]
    %v141 = vld [vmem:[#allocation5 + $0x250] sm:$0xff]
    %v142 = vld [vmem:[#allocation5 + $0x258] sm:$0xff]
    %v143 = vld [vmem:[#allocation5 + $0x260] sm:$0xff]
    %v144 = vld [vmem:[#allocation5 + $0x268] sm:$0xff]
    %v145 = vld [vmem:[#allocation5 + $0x270] sm:$0xff]
    %v146 = vld [vmem:[#allocation5 + $0x278] sm:$0xff]
    %v147 = vld [vmem:[#allocation5 + $0x280] sm:$0xff]
    %v148 = vld [vmem:[#allocation5 + $0x288] sm:$0xff]
    %v149 = vld [vmem:[#allocation5 + $0x290] sm:$0xff]
    %v150 = vld [vmem:[#allocation5 + $0x298] sm:$0xff]
    %v151 = vld [vmem:[#allocation5 + $0x2a0] sm:$0xff]
    %v152 = vld [vmem:[#allocation5 + $0x2a8] sm:$0xff]
    %v153 = vld [vmem:[#allocation5 + $0x2b0] sm:$0xff]
    %v154 = vld [vmem:[#allocation5 + $0x2b8] sm:$0xff]
    %v155 = vld [vmem:[#allocation5 + $0x2c0] sm:$0xff]
    %v156 = vld [vmem:[#allocation5 + $0x2c8] sm:$0xff]
    %v157 = vld [vmem:[#allocation5 + $0x2d0] sm:$0xff]
    %v158 = vld [vmem:[#allocation5 + $0x2d8] sm:$0xff]
    %v159 = vld [vmem:[#allocation5 + $0x2e0] sm:$0xff]
    %v160 = vld [vmem:[#allocation5 + $0x2e8] sm:$0xff]
    %v161 = vld [vmem:[#allocation5 + $0x2f0] sm:$0xff]
    %v162 = vld [vmem:[#allocation5 + $0x2f8] sm:$0xff]
    %v163 = vld [vmem:[#allocation5 + $0x300] sm:$0xff]
    %v164 = vld [vmem:[#allocation5 + $0x308] sm:$0xff]
    %v165 = vld [vmem:[#allocation5 + $0x310] sm:$0xff]
    %v166 = vld [vmem:[#allocation5 + $0x318] sm:$0xff]
    %v167 = vld [vmem:[#allocation5 + $0x320] sm:$0xff]
    %v168 = vld [vmem:[#allocation5 + $0x328] sm:$0xff]
    %v169 = vld [vmem:[#allocation5 + $0x330] sm:$0xff]
    %v170 = vld [vmem:[#allocation5 + $0x338] sm:$0xff]
    %v171 = vld [vmem:[#allocation5 + $0x340] sm:$0xff]
    %v172 = vld [vmem:[#allocation5 + $0x348] sm:$0xff]
    %v173 = vld [vmem:[#allocation5 + $0x350] sm:$0xff]
    %v174 = vld [vmem:[#allocation5 + $0x358] sm:$0xff]
    %v175 = vld [vmem:[#allocation5 + $0x360] sm:$0xff]
    %v176 = vld [vmem:[#allocation5 + $0x368] sm:$0xff]
    %v177 = vld [vmem:[#allocation5 + $0x370] sm:$0xff]
    %v178 = vld [vmem:[#allocation5 + $0x378] sm:$0xff]
    %v179 = vld [vmem:[#allocation5 + $0x380] sm:$0xff]
    %v180 = vld [vmem:[#allocation5 + $0x388] sm:$0xff]
    %v181 = vld [vmem:[#allocation5 + $0x390] sm:$0xff]
    %v182 = vld [vmem:[#allocation5 + $0x398] sm:$0xff]
    %v183 = vld [vmem:[#allocation5 + $0x3a0] sm:$0xff]
    %v184 = vld [vmem:[#allocation5 + $0x3a8] sm:$0xff]
    %v185 = vld [vmem:[#allocation5 + $0x3b0] sm:$0xff]
    %v186 = vld [vmem:[#allocation5 + $0x3b8] sm:$0xff]
    %v187 = vld [vmem:[#allocation5 + $0x3c0] sm:$0xff]
    %v188 = vld [vmem:[#allocation5 + $0x3c8] sm:$0xff]
    %v189 = vld [vmem:[#allocation5 + $0x3d0] sm:$0xff]
    %v190 = vld [vmem:[#allocation5 + $0x3d8] sm:$0xff]
    %v191 = vld [vmem:[#allocation5 + $0x3e0] sm:$0xff]
    %v192 = vld [vmem:[#allocation5 + $0x3e8] sm:$0xff]
    %v193 = vld [vmem:[#allocation5 + $0x3f0] sm:$0xff]
    %v194 = vld [vmem:[#allocation5 + $0x3f8] sm:$0xff]
    %v195 = vld [vmem:[#allocation5 + $0x400] sm:$0xff]
    %v196 = vld [vmem:[#allocation5 + $0x408] sm:$0xff]
    %v197 = vld [vmem:[#allocation5 + $0x410] sm:$0xff]
    %v198 = vld [vmem:[#allocation5 + $0x418] sm:$0xff]
    %v199 = vld [vmem:[#allocation5 + $0x420] sm:$0xff]
    %v200 = vld [vmem:[#allocation5 + $0x428] sm:$0xff]
    %v201 = vld [vmem:[#allocation5 + $0x430] sm:$0xff]
    %v202 = vld [vmem:[#allocation5 + $0x438] sm:$0xff]
    %v203 = vld [vmem:[#allocation5 + $0x440] sm:$0xff]
    %v204 = vld [vmem:[#allocation5 + $0x448] sm:$0xff]
    %v205 = vld [vmem:[#allocation5 + $0x450] sm:$0xff]
    %v206 = vld [vmem:[#allocation5 + $0x458] sm:$0xff]
    %v207 = vld [vmem:[#allocation5 + $0x460] sm:$0xff]
    %v208 = vld [vmem:[#allocation5 + $0x468] sm:$0xff]
    %v209 = vld [vmem:[#allocation5 + $0x470] sm:$0xff]
    %v210 = vld [vmem:[#allocation5 + $0x478] sm:$0xff]
    %v211 = vld [vmem:[#allocation5 + $0x480] sm:$0xff]
    %v212 = vld [vmem:[#allocation5 + $0x488] sm:$0xff]
    %v213 = vld [vmem:[#allocation5 + $0x490] sm:$0xff]
    %v214 = vld [vmem:[#allocation5 + $0x498] sm:$0xff]
    %v215 = vld [vmem:[#allocation5 + $0x4a0] sm:$0xff]
    %v216 = vld [vmem:[#allocation5 + $0x4a8] sm:$0xff]
    %v217 = vld [vmem:[#allocation5 + $0x4b0] sm:$0xff]
    %v218 = vld [vmem:[#allocation5 + $0x4b8] sm:$0xff]
    %v219 = vld [vmem:[#allocation5 + $0x4c0] sm:$0xff]
    %v220 = vld [vmem:[#allocation5 + $0x4c8] sm:$0xff]
    %v221 = vld [vmem:[#allocation5 + $0x4d0] sm:$0xff]
    %v222 = vld [vmem:[#allocation5 + $0x4d8] sm:$0xff]
    %v223 = vld [vmem:[#allocation5 + $0x4e0] sm:$0xff]
    %v224 = vld [vmem:[#allocation5 + $0x4e8] sm:$0xff]
    %v225 = vld [vmem:[#allocation5 + $0x4f0] sm:$0xff]
    %v226 = vld [vmem:[#allocation5 + $0x4f8] sm:$0xff]
    %v227 = vld [vmem:[#allocation5 + $0x500] sm:$0xff]
    %v228 = vld [vmem:[#allocation5 + $0x508] sm:$0xff]
    %v229 = vld [vmem:[#allocation5 + $0x510] sm:$0xff]
    %v230 = vld [vmem:[#allocation5 + $0x518] sm:$0xff]
    %v231 = vld [vmem:[#allocation5 + $0x520] sm:$0xff]
    %v232 = vld [vmem:[#allocation5 + $0x528] sm:$0xff]
    %v233 = vld [vmem:[#allocation5 + $0x530] sm:$0xff]
    %v234 = vld [vmem:[#allocation5 + $0x538] sm:$0xff]
    %v235 = vld [vmem:[#allocation5 + $0x540] sm:$0xff]
    %v236 = vld [vmem:[#allocation5 + $0x548] sm:$0xff]
    %v237 = vld [vmem:[#allocation5 + $0x550] sm:$0xff]
    %v238 = vld [vmem:[#allocation5 + $0x558] sm:$0xff]
    %v239 = vld [vmem:[#allocation5 + $0x560] sm:$0xff]
    %v240 = vld [vmem:[#allocation5 + $0x568] sm:$0xff]
    %v241 = vld [vmem:[#allocation5 + $0x570] sm:$0xff]
    %v242 = vld [vmem:[#allocation5 + $0x578] sm:$0xff]
    %v243 = vld [vmem:[#allocation5 + $0x580] sm:$0xff]
    %v244 = vld [vmem:[#allocation5 + $0x588] sm:$0xff]
    %v245 = vld [vmem:[#allocation5 + $0x590] sm:$0xff]
    %v246 = vld [vmem:[#allocation5 + $0x598] sm:$0xff]
    %v247 = vld [vmem:[#allocation5 + $0x5a0] sm:$0xff]
    %v248 = vld [vmem:[#allocation5 + $0x5a8] sm:$0xff]
    %v249 = vld [vmem:[#allocation5 + $0x5b0] sm:$0xff]
    %v250 = vld [vmem:[#allocation5 + $0x5b8] sm:$0xff]
    %v251 = vld [vmem:[#allocation5 + $0x5c0] sm:$0xff]
    %v252 = vld [vmem:[#allocation5 + $0x5c8] sm:$0xff]
    %v253 = vld [vmem:[#allocation5 + $0x5d0] sm:$0xff]
    %v254 = vld [vmem:[#allocation5 + $0x5d8] sm:$0xff]
    %v255 = vld [vmem:[#allocation5 + $0x5e0] sm:$0xff]
    %v256 = vld [vmem:[#allocation5 + $0x5e8] sm:$0xff]
    %v257 = vld [vmem:[#allocation5 + $0x5f0] sm:$0xff]
    %v258 = vld [vmem:[#allocation5 + $0x5f8] sm:$0xff]
    %v259 = vld [vmem:[#allocation5 + $0x600] sm:$0xff]
    %v260 = vld [vmem:[#allocation5 + $0x608] sm:$0xff]
    %v261 = vld [vmem:[#allocation5 + $0x610] sm:$0xff]
    %v262 = vld [vmem:[#allocation5 + $0x618] sm:$0xff]
    %v263 = vld [vmem:[#allocation5 + $0x620] sm:$0xff]
    %v264 = vld [vmem:[#allocation5 + $0x628] sm:$0xff]
    %v265 = vld [vmem:[#allocation5 + $0x630] sm:$0xff]
    %v266 = vld [vmem:[#allocation5 + $0x638] sm:$0xff]
    %v267 = vld [vmem:[#allocation5 + $0x640] sm:$0xff]
    %v268 = vld [vmem:[#allocation5 + $0x648] sm:$0xff]
    %v269 = vld [vmem:[#allocation5 + $0x650] sm:$0xff]
    %v270 = vld [vmem:[#allocation5 + $0x658] sm:$0xff]
    %v271 = vld [vmem:[#allocation5 + $0x660] sm:$0xff]
    %v272 = vld [vmem:[#allocation5 + $0x668] sm:$0xff]
    %v273 = vld [vmem:[#allocation5 + $0x670] sm:$0xff]
    %v274 = vld [vmem:[#allocation5 + $0x678] sm:$0xff]
    %v275 = vld [vmem:[#allocation5 + $0x680] sm:$0xff]
    %v276 = vld [vmem:[#allocation5 + $0x688] sm:$0xff]
    %v277 = vld [vmem:[#allocation5 + $0x690] sm:$0xff]
    %v278 = vld [vmem:[#allocation5 + $0x698] sm:$0xff]
    %v279 = vld [vmem:[#allocation5 + $0x6a0] sm:$0xff]
    %v280 = vld [vmem:[#allocation5 + $0x6a8] sm:$0xff]
    %v281 = vld [vmem:[#allocation5 + $0x6b0] sm:$0xff]
    %v282 = vld [vmem:[#allocation5 + $0x6b8] sm:$0xff]
    %v283 = vld [vmem:[#allocation5 + $0x6c0] sm:$0xff]
    %v284 = vld [vmem:[#allocation5 + $0x6c8] sm:$0xff]
    %v285 = vld [vmem:[#allocation5 + $0x6d0] sm:$0xff]
    %v286 = vld [vmem:[#allocation5 + $0x6d8] sm:$0xff]
    %v287 = vld [vmem:[#allocation5 + $0x6e0] sm:$0xff]
    %v288 = vld [vmem:[#allocation5 + $0x6e8] sm:$0xff]
    %v289 = vld [vmem:[#allocation5 + $0x6f0] sm:$0xff]
    %v290 = vld [vmem:[#allocation5 + $0x6f8] sm:$0xff]
    %v291 = vld [vmem:[%s2] sm:$0x3]
    %v293 = vlaneseq
    %v294 = vshrl.u32 %v293, 7
    %v295 = vsub.s32 0, %v294
    %v296 = vrot.slane %v291, %v295
    %v297 = vlaneseq
    %v298 = vshrl.u32 %v297, 7
    %v299 = vsub.s32 1, %v298
    %v300 = vrot.slane %v291, %v299
    %303 = vmatprep.subr.mxu0 %v98
    %304 = vmatpush1.msra.mxu0 %v97
    %305 = vmatprep.subr.mxu0 %v96
    %306 = vmatpush1.msra.mxu0 %v95
    %307 = vmatprep.subr.mxu0 %v94
    %308 = vmatpush1.msra.mxu0 %v93
    %309 = vmatprep.subr.mxu0 %v92
    %310 = vmatpush1.msra.mxu0 %v91
    %311 = vmatprep.subr.mxu0 %v90
    %312 = vmatpush1.msra.mxu0 %v89
    %313 = vmatprep.subr.mxu0 %v88
    %314 = vmatpush1.msra.mxu0 %v87
    %315 = vmatprep.subr.mxu0 %v86
    %316 = vmatpush1.msra.mxu0 %v85
    %317 = vmatprep.subr.mxu0 %v84
    %318 = vmatpush1.msra.mxu0 %v83
    %319 = vmatprep.subr.mxu0 %v82
    %320 = vmatpush1.msra.mxu0 %v81
    %321 = vmatprep.subr.mxu0 %v80
    %322 = vmatpush1.msra.mxu0 %v79
    %323 = vmatprep.subr.mxu0 %v78
    %324 = vmatpush1.msra.mxu0 %v77
    %325 = vmatprep.subr.mxu0 %v76
    %326 = vmatpush1.msra.mxu0 %v75
    %327 = vmatprep.subr.mxu0 %v74
    %328 = vmatpush1.msra.mxu0 %v73
    %329 = vmatprep.subr.mxu0 %v72
    %330 = vmatpush1.msra.mxu0 %v71
    %331 = vmatprep.subr.mxu0 %v70
    %332 = vmatpush1.msra.mxu0 %v69
    %333 = vmatprep.subr.mxu0 %v68
    %334 = vmatpush1.msra.mxu0 %v67
    %335 = vmatprep.subr.mxu0 %v130
    %336 = vmatpush2.msra.mxu0 %v129
    %337 = vmatprep.subr.mxu0 %v128
    %338 = vmatpush2.msra.mxu0 %v127
    %339 = vmatprep.subr.mxu0 %v126
    %340 = vmatpush2.msra.mxu0 %v125
    %341 = vmatprep.subr.mxu0 %v124
    %342 = vmatpush2.msra.mxu0 %v123
    %343 = vmatprep.subr.mxu0 %v122
    %344 = vmatpush2.msra.mxu0 %v121
    %345 = vmatprep.subr.mxu0 %v120
    %346 = vmatpush2.msra.mxu0 %v119
    %347 = vmatprep.subr.mxu0 %v118
    %348 = vmatpush2.msra.mxu0 %v117
    %349 = vmatprep.subr.mxu0 %v116
    %350 = vmatpush2.msra.mxu0 %v115
    %351 = vmatprep.subr.mxu0 %v114
    %352 = vmatpush2.msra.mxu0 %v113
    %353 = vmatprep.subr.mxu0 %v112
    %354 = vmatpush2.msra.mxu0 %v111
    %355 = vmatprep.subr.mxu0 %v110
    %356 = vmatpush2.msra.mxu0 %v109
    %357 = vmatprep.subr.mxu0 %v108
    %358 = vmatpush2.msra.mxu0 %v107
    %359 = vmatprep.subr.mxu0 %v106
    %360 = vmatpush2.msra.mxu0 %v105
    %361 = vmatprep.subr.mxu0 %v104
    %362 = vmatpush2.msra.mxu0 %v103
    %363 = vmatprep.subr.mxu0 %v102
    %364 = vmatpush2.msra.mxu0 %v101
    %365 = vmatprep.subr.mxu0 %v100
    %366 = vmatpush2.msra.mxu0 %v99
    %367 = vmatprep.mubr.f32.mxu0 %v61
    %368 = vmatmul.mubr.f32.gmra.mxu0 %v60
    %v369 = vpop.f32.mrf.mxu0
    %v370 = vadd.f32 %v296, %v369
    %v371 = vpop.f32.mrf.mxu0
    %v372 = vadd.f32 %v300, %v371
    %373 = vdwg.mxu0
    %374 = vmatprep.subr.mxu0 %v162
    %375 = vmatpush1.msra.mxu0 %v161
    %376 = vmatprep.subr.mxu0 %v160
    %377 = vmatpush1.msra.mxu0 %v159
    %378 = vmatprep.subr.mxu0 %v158
    %379 = vmatpush1.msra.mxu0 %v157
    %380 = vmatprep.subr.mxu0 %v156
    %381 = vmatpush1.msra.mxu0 %v155
    %382 = vmatprep.subr.mxu0 %v154
    %383 = vmatpush1.msra.mxu0 %v153
    %384 = vmatprep.subr.mxu0 %v152
    %385 = vmatpush1.msra.mxu0 %v151
    %386 = vmatprep.subr.mxu0 %v150
    %387 = vmatpush1.msra.mxu0 %v149
    %388 = vmatprep.subr.mxu0 %v148
    %389 = vmatpush1.msra.mxu0 %v147
    %390 = vmatprep.subr.mxu0 %v146
    %391 = vmatpush1.msra.mxu0 %v145
    %392 = vmatprep.subr.mxu0 %v144
    %393 = vmatpush1.msra.mxu0 %v143
    %394 = vmatprep.subr.mxu0 %v142
    %395 = vmatpush1.msra.mxu0 %v141
    %396 = vmatprep.subr.mxu0 %v140
    %397 = vmatpush1.msra.mxu0 %v139
    %398 = vmatprep.subr.mxu0 %v138
    %399 = vmatpush1.msra.mxu0 %v137
    %400 = vmatprep.subr.mxu0 %v136
    %401 = vmatpush1.msra.mxu0 %v135
    %402 = vmatprep.subr.mxu0 %v134
    %403 = vmatpush1.msra.mxu0 %v133
    %404 = vmatprep.subr.mxu0 %v132
    %405 = vmatpush1.msra.mxu0 %v131
    %406 = vmatprep.subr.mxu0 %v194
    %407 = vmatpush2.msra.mxu0 %v193
    %408 = vmatprep.subr.mxu0 %v192
    %409 = vmatpush2.msra.mxu0 %v191
    %410 = vmatprep.subr.mxu0 %v190
    %411 = vmatpush2.msra.mxu0 %v189
    %412 = vmatprep.subr.mxu0 %v188
    %413 = vmatpush2.msra.mxu0 %v187
    %414 = vmatprep.subr.mxu0 %v186
    %415 = vmatpush2.msra.mxu0 %v185
    %416 = vmatprep.subr.mxu0 %v184
    %417 = vmatpush2.msra.mxu0 %v183
    %418 = vmatprep.subr.mxu0 %v182
    %419 = vmatpush2.msra.mxu0 %v181
    %420 = vmatprep.subr.mxu0 %v180
    %421 = vmatpush2.msra.mxu0 %v179
    %422 = vmatprep.subr.mxu0 %v178
    %423 = vmatpush2.msra.mxu0 %v177
    %424 = vmatprep.subr.mxu0 %v176
    %425 = vmatpush2.msra.mxu0 %v175
    %426 = vmatprep.subr.mxu0 %v174
    %427 = vmatpush2.msra.mxu0 %v173
    %428 = vmatprep.subr.mxu0 %v172
    %429 = vmatpush2.msra.mxu0 %v171
    %430 = vmatprep.subr.mxu0 %v170
    %431 = vmatpush2.msra.mxu0 %v169
    %432 = vmatprep.subr.mxu0 %v168
    %433 = vmatpush2.msra.mxu0 %v167
    %434 = vmatprep.subr.mxu0 %v166
    %435 = vmatpush2.msra.mxu0 %v165
    %436 = vmatprep.subr.mxu0 %v164
    %437 = vmatpush2.msra.mxu0 %v163
    %438 = vmatprep.mubr.f32.mxu0 %v63
    %439 = vmatmul.mubr.f32.gmra.mxu0 %v62
    %v440 = vpop.f32.mrf.mxu0
    %v441 = vadd.f32 %v370, %v440
    %v442 = vpop.f32.mrf.mxu0
    %v443 = vadd.f32 %v372, %v442
    %444 = vdwg.mxu0
    %445 = vmatprep.subr.mxu0 %v226
    %446 = vmatpush1.msra.mxu0 %v225
    %447 = vmatprep.subr.mxu0 %v224
    %448 = vmatpush1.msra.mxu0 %v223
    %449 = vmatprep.subr.mxu0 %v222
    %450 = vmatpush1.msra.mxu0 %v221
    %451 = vmatprep.subr.mxu0 %v220
    %452 = vmatpush1.msra.mxu0 %v219
    %453 = vmatprep.subr.mxu0 %v218
    %454 = vmatpush1.msra.mxu0 %v217
    %455 = vmatprep.subr.mxu0 %v216
    %456 = vmatpush1.msra.mxu0 %v215
    %457 = vmatprep.subr.mxu0 %v214
    %458 = vmatpush1.msra.mxu0 %v213
    %459 = vmatprep.subr.mxu0 %v212
    %460 = vmatpush1.msra.mxu0 %v211
    %461 = vmatprep.subr.mxu0 %v210
    %462 = vmatpush1.msra.mxu0 %v209
    %463 = vmatprep.subr.mxu0 %v208
    %464 = vmatpush1.msra.mxu0 %v207
    %465 = vmatprep.subr.mxu0 %v206
    %466 = vmatpush1.msra.mxu0 %v205
    %467 = vmatprep.subr.mxu0 %v204
    %468 = vmatpush1.msra.mxu0 %v203
    %469 = vmatprep.subr.mxu0 %v202
    %470 = vmatpush1.msra.mxu0 %v201
    %471 = vmatprep.subr.mxu0 %v200
    %472 = vmatpush1.msra.mxu0 %v199
    %473 = vmatprep.subr.mxu0 %v198
    %474 = vmatpush1.msra.mxu0 %v197
    %475 = vmatprep.subr.mxu0 %v196
    %476 = vmatpush1.msra.mxu0 %v195
    %477 = vmatprep.subr.mxu0 %v258
    %478 = vmatpush2.msra.mxu0 %v257
    %479 = vmatprep.subr.mxu0 %v256
    %480 = vmatpush2.msra.mxu0 %v255
    %481 = vmatprep.subr.mxu0 %v254
    %482 = vmatpush2.msra.mxu0 %v253
    %483 = vmatprep.subr.mxu0 %v252
    %484 = vmatpush2.msra.mxu0 %v251
    %485 = vmatprep.subr.mxu0 %v250
    %486 = vmatpush2.msra.mxu0 %v249
    %487 = vmatprep.subr.mxu0 %v248
    %488 = vmatpush2.msra.mxu0 %v247
    %489 = vmatprep.subr.mxu0 %v246
    %490 = vmatpush2.msra.mxu0 %v245
    %491 = vmatprep.subr.mxu0 %v244
    %492 = vmatpush2.msra.mxu0 %v243
    %493 = vmatprep.subr.mxu0 %v242
    %494 = vmatpush2.msra.mxu0 %v241
    %495 = vmatprep.subr.mxu0 %v240
    %496 = vmatpush2.msra.mxu0 %v239
    %497 = vmatprep.subr.mxu0 %v238
    %498 = vmatpush2.msra.mxu0 %v237
    %499 = vmatprep.subr.mxu0 %v236
    %500 = vmatpush2.msra.mxu0 %v235
    %501 = vmatprep.subr.mxu0 %v234
    %502 = vmatpush2.msra.mxu0 %v233
    %503 = vmatprep.subr.mxu0 %v232
    %504 = vmatpush2.msra.mxu0 %v231
    %505 = vmatprep.subr.mxu0 %v230
    %506 = vmatpush2.msra.mxu0 %v229
    %507 = vmatprep.subr.mxu0 %v228
    %508 = vmatpush2.msra.mxu0 %v227
    %509 = vmatprep.mubr.f32.mxu0 %v65
    %510 = vmatmul.mubr.f32.gmra.mxu0 %v64
    %v511 = vpop.f32.mrf.mxu0
    %v512 = vadd.f32 %v441, %v511
    %v513 = vpop.f32.mrf.mxu0
    %v514 = vadd.f32 %v443, %v513
    %515 = vdwg.mxu0
    %516 = vmatprep.subr.mxu0 %v290
    %517 = vmatpush1.msra.mxu0 %v289
    %518 = vmatprep.subr.mxu0 %v288
    %519 = vmatpush1.msra.mxu0 %v287
    %520 = vmatprep.subr.mxu0 %v286
    %521 = vmatpush1.msra.mxu0 %v285
    %522 = vmatprep.subr.mxu0 %v284
    %523 = vmatpush1.msra.mxu0 %v283
    %524 = vmatprep.subr.mxu0 %v282
    %525 = vmatpush1.msra.mxu0 %v281
    %526 = vmatprep.subr.mxu0 %v280
    %527 = vmatpush1.msra.mxu0 %v279
    %528 = vmatprep.subr.mxu0 %v278
    %529 = vmatpush1.msra.mxu0 %v277
    %530 = vmatprep.subr.mxu0 %v276
    %531 = vmatpush1.msra.mxu0 %v275
    %532 = vmatprep.subr.mxu0 %v274
    %533 = vmatpush1.msra.mxu0 %v273
    %534 = vmatprep.subr.mxu0 %v272
    %535 = vmatpush1.msra.mxu0 %v271
    %536 = vmatprep.subr.mxu0 %v270
    %537 = vmatpush1.msra.mxu0 %v269
    %538 = vmatprep.subr.mxu0 %v268
    %539 = vmatpush1.msra.mxu0 %v267
    %540 = vmatprep.subr.mxu0 %v266
    %541 = vmatpush1.msra.mxu0 %v265
    %542 = vmatprep.subr.mxu0 %v264
    %543 = vmatpush1.msra.mxu0 %v263
    %544 = vmatprep.subr.mxu0 %v262
    %545 = vmatpush1.msra.mxu0 %v261
    %546 = vmatprep.subr.mxu0 %v260
    %547 = vmatpush1.msra.mxu0 %v259
    %548 = vmatprep.subr.mxu0 0.0
    %549 = vmatpush2.msra.mxu0 0.0
    %550 = vmatprep.subr.mxu0 0.0
    %551 = vmatpush2.msra.mxu0 0.0
    %552 = vmatprep.subr.mxu0 0.0
    %553 = vmatpush2.msra.mxu0 0.0
    %554 = vmatprep.subr.mxu0 0.0
    %555 = vmatpush2.msra.mxu0 0.0
    %556 = vmatprep.subr.mxu0 0.0
    %557 = vmatpush2.msra.mxu0 0.0
    %558 = vmatprep.subr.mxu0 0.0
    %559 = vmatpush2.msra.mxu0 0.0
    %560 = vmatprep.subr.mxu0 0.0
    %561 = vmatpush2.msra.mxu0 0.0
    %562 = vmatprep.subr.mxu0 0.0
    %563 = vmatpush2.msra.mxu0 0.0
    %564 = vmatprep.subr.mxu0 0.0
    %565 = vmatpush2.msra.mxu0 0.0
    %566 = vmatprep.subr.mxu0 0.0
    %567 = vmatpush2.msra.mxu0 0.0
    %568 = vmatprep.subr.mxu0 0.0
    %569 = vmatpush2.msra.mxu0 0.0
    %570 = vmatprep.subr.mxu0 0.0
    %571 = vmatpush2.msra.mxu0 0.0
    %572 = vmatprep.subr.mxu0 0.0
    %573 = vmatpush2.msra.mxu0 0.0
    %574 = vmatprep.subr.mxu0 0.0
    %575 = vmatpush2.msra.mxu0 0.0
    %576 = vmatprep.subr.mxu0 0.0
    %577 = vmatpush2.msra.mxu0 0.0
    %578 = vmatprep.subr.mxu0 0.0
    %579 = vmatpush2.msra.mxu0 0.0
    %580 = vmatprep.mubr.f32.mxu0 0.0
    %581 = vmatmul.mubr.f32.gmra.mxu0 %v66
    %v582 = vpop.f32.mrf.mxu0
    %v583 = vadd.f32 %v512, %v582
    %v584 = vpop.f32.mrf.mxu0
    %v585 = vadd.f32 %v514, %v584
    %586 = vdwg.mxu0
    %v587 = vmax.f32 %v583, 0.0
    %v588 = vmax.f32 %v585, 0.0
    %v589 = vld [vmem:[#allocation7] sm:$0xff]
    %v590 = vld [vmem:[#allocation7 + $0x8] sm:$0xff]
    %v591 = vld [vmem:[#allocation7 + $0x10] sm:$0xff]
    %v592 = vld [vmem:[#allocation7 + $0x18] sm:$0xff]
    %v593 = vld [vmem:[#allocation7 + $0x20] sm:$0xff]
    %v594 = vld [vmem:[#allocation7 + $0x28] sm:$0xff]
    %v595 = vld [vmem:[#allocation7 + $0x30] sm:$0xff]
    %v596 = vld [vmem:[#allocation7 + $0x38] sm:$0xff]
    %v597 = vld [vmem:[#allocation7 + $0x40] sm:$0xff]
    %v598 = vld [vmem:[#allocation7 + $0x48] sm:$0xff]
    %v599 = vld [vmem:[#allocation7 + $0x50] sm:$0xff]
    %v600 = vld [vmem:[#allocation7 + $0x58] sm:$0xff]
    %v601 = vld [vmem:[#allocation7 + $0x60] sm:$0xff]
    %v602 = vld [vmem:[#allocation7 + $0x68] sm:$0xff]
    %v603 = vld [vmem:[#allocation7 + $0x70] sm:$0xff]
    %v604 = vld [vmem:[#allocation7 + $0x78] sm:$0xff]
    %v605 = vld [vmem:[#allocation7 + $0x80] sm:$0xff]
    %v606 = vld [vmem:[#allocation7 + $0x88] sm:$0xff]
    %v607 = vld [vmem:[#allocation7 + $0x90] sm:$0xff]
    %v608 = vld [vmem:[#allocation7 + $0x98] sm:$0xff]
    %v609 = vld [vmem:[#allocation7 + $0xa0] sm:$0xff]
    %v610 = vld [vmem:[#allocation7 + $0xa8] sm:$0xff]
    %v611 = vld [vmem:[#allocation7 + $0xb0] sm:$0xff]
    %v612 = vld [vmem:[#allocation7 + $0xb8] sm:$0xff]
    %v613 = vld [vmem:[#allocation7 + $0xc0] sm:$0xff]
    %v614 = vld [vmem:[#allocation7 + $0xc8] sm:$0xff]
    %v615 = vld [vmem:[#allocation7 + $0xd0] sm:$0xff]
    %v616 = vld [vmem:[#allocation7 + $0xd8] sm:$0xff]
    %v617 = vld [vmem:[#allocation7 + $0xe0] sm:$0xff]
    %v618 = vld [vmem:[#allocation7 + $0xe8] sm:$0xff]
    %v619 = vld [vmem:[#allocation7 + $0xf0] sm:$0xff]
    %v620 = vld [vmem:[#allocation7 + $0xf8] sm:$0xff]
    %v621 = vld [vmem:[%s4] sm:$0x1]
    %v623 = vlaneseq
    %v624 = vshrl.u32 %v623, 7
    %v625 = vsub.s32 0, %v624
    %v626 = vrot.slane %v621, %v625
    %628 = vmatprep.subr.mxu0 0.0
    %629 = vmatpush1.msra.mxu0 %v604
    %630 = vmatprep.subr.mxu0 0.0
    %631 = vmatpush1.msra.mxu0 %v603
    %632 = vmatprep.subr.mxu0 0.0
    %633 = vmatpush1.msra.mxu0 %v602
    %634 = vmatprep.subr.mxu0 0.0
    %635 = vmatpush1.msra.mxu0 %v601
    %636 = vmatprep.subr.mxu0 0.0
    %637 = vmatpush1.msra.mxu0 %v600
    %638 = vmatprep.subr.mxu0 0.0
    %639 = vmatpush1.msra.mxu0 %v599
    %640 = vmatprep.subr.mxu0 0.0
    %641 = vmatpush1.msra.mxu0 %v598
    %642 = vmatprep.subr.mxu0 0.0
    %643 = vmatpush1.msra.mxu0 %v597
    %644 = vmatprep.subr.mxu0 0.0
    %645 = vmatpush1.msra.mxu0 %v596
    %646 = vmatprep.subr.mxu0 0.0
    %647 = vmatpush1.msra.mxu0 %v595
    %648 = vmatprep.subr.mxu0 0.0
    %649 = vmatpush1.msra.mxu0 %v594
    %650 = vmatprep.subr.mxu0 0.0
    %651 = vmatpush1.msra.mxu0 %v593
    %652 = vmatprep.subr.mxu0 0.0
    %653 = vmatpush1.msra.mxu0 %v592
    %654 = vmatprep.subr.mxu0 0.0
    %655 = vmatpush1.msra.mxu0 %v591
    %656 = vmatprep.subr.mxu0 0.0
    %657 = vmatpush1.msra.mxu0 %v590
    %658 = vmatprep.subr.mxu0 0.0
    %659 = vmatpush1.msra.mxu0 %v589
    %660 = vmatprep.subr.mxu0 0.0
    %661 = vmatpush2.msra.mxu0 %v620
    %662 = vmatprep.subr.mxu0 0.0
    %663 = vmatpush2.msra.mxu0 %v619
    %664 = vmatprep.subr.mxu0 0.0
    %665 = vmatpush2.msra.mxu0 %v618
    %666 = vmatprep.subr.mxu0 0.0
    %667 = vmatpush2.msra.mxu0 %v617
    %668 = vmatprep.subr.mxu0 0.0
    %669 = vmatpush2.msra.mxu0 %v616
    %670 = vmatprep.subr.mxu0 0.0
    %671 = vmatpush2.msra.mxu0 %v615
    %672 = vmatprep.subr.mxu0 0.0
    %673 = vmatpush2.msra.mxu0 %v614
    %674 = vmatprep.subr.mxu0 0.0
    %675 = vmatpush2.msra.mxu0 %v613
    %676 = vmatprep.subr.mxu0 0.0
    %677 = vmatpush2.msra.mxu0 %v612
    %678 = vmatprep.subr.mxu0 0.0
    %679 = vmatpush2.msra.mxu0 %v611
    %680 = vmatprep.subr.mxu0 0.0
    %681 = vmatpush2.msra.mxu0 %v610
    %682 = vmatprep.subr.mxu0 0.0
    %683 = vmatpush2.msra.mxu0 %v609
    %684 = vmatprep.subr.mxu0 0.0
    %685 = vmatpush2.msra.mxu0 %v608
    %686 = vmatprep.subr.mxu0 0.0
    %687 = vmatpush2.msra.mxu0 %v607
    %688 = vmatprep.subr.mxu0 0.0
    %689 = vmatpush2.msra.mxu0 %v606
    %690 = vmatprep.subr.mxu0 0.0
    %691 = vmatpush2.msra.mxu0 %v605
    %692 = vmatprep.mubr.f32.mxu0 %v588
    %693 = vmatmul.mubr.f32.gmra.mxu0 %v587
    %v694 = vpop.f32.mrf.mxu0
    %v695 = vadd.f32 %v626, %v694
    %v696 = vpop.f32.mrf.mxu0
    %697 = vdwg.mxu0
    %698 = vmax.xlane.f32.xlu0 %v695
    %v699 = vpop.xlane.xlu0 %698
    %v700 = vsub.f32 %v695, %v699
    %v701 = vmul.f32 %v700, 1.442695
    %v702 = vpow.pop %v701
    %703 = vadd.xlane.f32.xlu0 %v702
    %v704 = vpop.xlane.xlu0 %703
    %v705 = vrcp.pop %v704
    %v706 = vmul.f32 %v702, %v705
    %707 = vst [vmem:[#allocation8] sm:$0xff] %v706
    // Predicated region
    $region34: #{tpu_custom_call.1} parent=1 // pred_check
      _
    $region35: #{tpu_custom_call.1} parent=1 // pred_check_branch
      %709 = sbr.rel (0) target = $region37
    $region36: #{tpu_custom_call.1} parent=1 // pred_region
      %s711 = ssub.s32 128, 128
      %712 = vsyncadd [#allocation4], %s711
      %s714 = sshll.u32 [#allocation8], 4
      %s715 = int_to_ptr.vmem [resolvable:$true] %s714
      %717 = dma.vmem_to_hbm [thread:$0]  %s715, 128, %s5, [#allocation4]
    $region37: #{tpu_custom_call.1} parent=1 // pred_fallthru
      _
    // Predicated region
    $region38: #{tpu_custom_call.1} parent=1 // pred_check
      _
    $region39: #{tpu_custom_call.1} parent=1 // pred_check_branch
      %719 = sbr.rel (0) target = $region41
    $region40: #{tpu_custom_call.1} parent=1 // pred_region
      %720 = dma.done [#allocation4], 128
    $region41: #{tpu_custom_call.1} parent=1 // pred_fallthru
      _
    %721 = vsyncpa [#allocation3], 1
    %722 = vsyncpa [#allocation6], 1
    %723 = vsyncpa [#allocation4], 1

</llo_original>
